<compile_context>
chip_gen: v5e
topology: v5e:2x2
jax: 0.10.0
libtpu: 0.0.40
codegen_flags: <defaults>
</compile_context>

<pallas_src>
import functools
from math import sqrt

import jax
import jax.numpy as jnp
from jax import lax
from jax.experimental import pallas as pl
from jax.experimental.pallas import tpu as pltpu


def _round_up(x, m):
    return (x + m - 1) // m * m


def _gaussian2d_kernel(params_ref, coef_ref, ax_ref, ay_ref, out_ref, *,
                       inv_sx, inv_sy):
    # params_ref: (TB, 4)   x0, y0, intensity, background per emitter
    # coef_ref:   (3, K)    row0: packed pixel-coordinate args
    #                       row1: x-lane selector (1 on the 2W x lanes)
    #                       row2: y-lane selector (1 on the 2H y lanes)
    # ax_ref:     (K, HW)   +/-1 expansion matrix: column k picks erf(xp_j)-erf(xm_j), j=k%W
    # ay_ref:     (K, HW)   +/-1 expansion matrix: column k picks erf(yp_i)-erf(ym_i), i=k//W
    # out_ref:    (TB, HW)  lane-dense flat output tile
    x0 = params_ref[:, 0:1]          # (TB, 1)
    y0 = params_ref[:, 1:2]
    intensity = params_ref[:, 2:3]
    background = params_ref[:, 3:4]

    coords = coef_ref[0:1, :]        # (1, K)
    sel_x = coef_ref[1:2, :]         # (1, K)
    sel_y = coef_ref[2:3, :]         # (1, K)

    # Per-emitter centers broadcast onto the packed lanes (x-center on x lanes,
    # y-center on y lanes); only narrow (TB, K) elementwise work here.
    centers = (x0 * inv_sx) * sel_x + (y0 * inv_sy) * sel_y    # (TB, K)

    # Only 2W + 2H erf evaluations per emitter (dominant VALU cost, now tiny).
    e = lax.erf(coords - centers)                              # (TB, K)

    # Fold 0.25*intensity into the narrow x-lane factor before expansion.
    e = e * ((0.25 * intensity) * sel_x + sel_y)               # (TB, K)

    # Expand the narrow factors to the full flat image on the MXU.
    # +/-1 matrices are exact; HIGHEST precision keeps f32 accuracy so the
    # 1e-3 atol holds at intensity ~2000.
    ex_full = jnp.dot(e, ax_ref[...],
                      precision=lax.Precision.HIGHEST,
                      preferred_element_type=jnp.float32)       # (TB, HW)
    ey_full = jnp.dot(e, ay_ref[...],
                      precision=lax.Precision.HIGHEST,
                      preferred_element_type=jnp.float32)       # (TB, HW)

    # Full-width path: one multiply + one add per element.
    out_ref[...] = (ex_full * ey_full + background).astype(out_ref.dtype)


def gaussian2d_model(params, shape, sigma_x, sigma_y, *, emitters_per_step=2048):
    """Pallas equivalent of Gaussian2DModel(shape, sigma_x, sigma_y)(params)."""
    h, w = shape
    hw = h * w
    k = 2 * w + 2 * h                       # packed erf-argument width (64 for 16x16)
    batch = params.shape[0]
    params = params.astype(jnp.float32)

    inv_sx = 1.0 / (sqrt(2.0) * float(sigma_x))
    inv_sy = 1.0 / (sqrt(2.0) * float(sigma_y))

    # --- batch-tile sizing (multiple of 8 sublanes) --------------------------
    tb = min(int(emitters_per_step), _round_up(batch, 8))
    tb = max(8, _round_up(tb, 8))
    padded = _round_up(batch, tb)
    # Guarantee >= 2 grid steps so v7x's two TensorCores both get work
    # (no effect on the single-TC v5e/v6e beyond a second cheap step).
    if padded // tb < 2 and batch > 8:
        tb = max(8, _round_up(pl.cdiv(padded, 2), 8))
        padded = _round_up(batch, tb)
    if padded != batch:
        params = jnp.pad(params, ((0, padded - batch), (0, 0)))

    # --- tiny constant tables (built once, outside the hot loop) -------------
    jj = jnp.arange(w, dtype=jnp.float32)
    ii = jnp.arange(h, dtype=jnp.float32)
    coords = jnp.concatenate([(jj + 0.5) * inv_sx, (jj - 0.5) * inv_sx,
                              (ii + 0.5) * inv_sy, (ii - 0.5) * inv_sy])   # (K,)
    sel_x = jnp.concatenate([jnp.ones(2 * w, jnp.float32),
                             jnp.zeros(2 * h, jnp.float32)])               # (K,)
    sel_y = 1.0 - sel_x
    coef = jnp.stack([coords, sel_x, sel_y], axis=0)                       # (3, K)

    rows = jnp.arange(k)[:, None]                     # (K, 1)
    kcol = (jnp.arange(hw) % w)[None, :]              # (1, HW)  -> j = k % W
    krow = (jnp.arange(hw) // w)[None, :]             # (1, HW)  -> i = k // W
    ax = (((rows < w) & (kcol == rows)).astype(jnp.float32)
          - ((rows >= w) & (rows < 2 * w)
             & (kcol == rows - w)).astype(jnp.float32))                    # (K, HW)
    ay = (((rows >= 2 * w) & (rows < 2 * w + h)
           & (krow == rows - 2 * w)).astype(jnp.float32)
          - ((rows >= 2 * w + h)
             & (krow == rows - 2 * w - h)).astype(jnp.float32))            # (K, HW)

    kernel = functools.partial(_gaussian2d_kernel, inv_sx=inv_sx, inv_sy=inv_sy)

    out_flat = pl.pallas_call(
        kernel,
        out_shape=jax.ShapeDtypeStruct((padded, hw), jnp.float32),
        grid=(padded // tb,),
        in_specs=[
            pl.BlockSpec((tb, 4), lambda b: (b, 0)),    # params tile
            pl.BlockSpec((3, k), lambda b: (0, 0)),     # packed coords + selectors
            pl.BlockSpec((k, hw), lambda b: (0, 0)),    # x expansion matrix
            pl.BlockSpec((k, hw), lambda b: (0, 0)),    # y expansion matrix
        ],
        out_specs=pl.BlockSpec((tb, hw), lambda b: (b, 0)),
        compiler_params=pltpu.CompilerParams(
            dimension_semantics=("parallel",),
            vmem_limit_bytes=32 * 1024 * 1024),
    )(params, coef, ax, ay)

    return out_flat[:batch].reshape(batch, h, w)


def _gaussian2d_ref(params, shape, sigma_x, sigma_y):
    """Pure-JAX reference mirroring the PyTorch code, for verification."""
    h, w = shape
    x0 = params[:, 0][:, None, None]
    y0 = params[:, 1][:, None, None]
    intensity = params[:, 2][:, None, None]
    background = params[:, 3][:, None, None]
    xx = jnp.arange(w, dtype=jnp.float32)[None, None, :]
    yy = jnp.arange(h, dtype=jnp.float32)[None, :, None]
    erf_x1 = lax.erf((xx - x0 + 0.5) / (sqrt(2.0) * sigma_x))
    erf_x2 = lax.erf((xx - x0 - 0.5) / (sqrt(2.0) * sigma_x))
    erf_y1 = lax.erf((yy - y0 + 0.5) / (sqrt(2.0) * sigma_y))
    erf_y2 = lax.erf((yy - y0 - 0.5) / (sqrt(2.0) * sigma_y))
    return 0.25 * intensity * (erf_x1 - erf_x2) * (erf_y1 - erf_y2) + background


def _make_params(key, batch, h, w):
    k1, k2, k3, k4 = jax.random.split(key, 4)
    x0 = jax.random.uniform(k1, (batch,), jnp.float32, 3.0, w - 3.0)
    y0 = jax.random.uniform(k2, (batch,), jnp.float32, 3.0, h - 3.0)
    intensity = jax.random.uniform(k3, (batch,), jnp.float32, 500.0, 2000.0)
    background = jax.random.uniform(k4, (batch,), jnp.float32, 1.0, 10.0)
    return jnp.stack([x0, y0, intensity, background], axis=1)


if __name__ == "__main__":
    key = jax.random.PRNGKey(0)
    h, w = 16, 16
    sigma_x, sigma_y = 1.3, 1.5

    # Small case (matches the module's typical ROI), single grid step.
    params = _make_params(key, 8, h, w)
    out = jax.block_until_ready(gaussian2d_model(params, (h, w), sigma_x, sigma_y))
    ref = _gaussian2d_ref(params, (h, w), sigma_x, sigma_y)
    assert out.shape == (8, h, w)
    assert jnp.allclose(out, ref, atol=1e-3, rtol=1e-4), "mismatch vs reference"

    # Non-multiple-of-tile batch: exercises padding, slicing and the >=2-step split.
    params2 = _make_params(jax.random.PRNGKey(1), 300, h, w)
    out2 = jax.block_until_ready(gaussian2d_model(params2, (h, w), sigma_x, sigma_y))
    ref2 = _gaussian2d_ref(params2, (h, w), sigma_x, sigma_y)
    assert out2.shape == (300, h, w)
    assert jnp.allclose(out2, ref2, atol=1e-3, rtol=1e-4), "mismatch vs reference"

    print("KERNEL_OK")
</pallas_src>

<mosaic_0001>
module attributes {stable_mosaic.version = 11 : i64} {
  func.func @_gaussian2d_kernel(%arg0: i32, %arg1: memref<8x4xf32, #tpu.memory_space<vmem>>, %arg2: memref<3x64xf32, #tpu.memory_space<vmem>>, %arg3: memref<64x256xf32, #tpu.memory_space<vmem>>, %arg4: memref<64x256xf32, #tpu.memory_space<vmem>>, %arg5: memref<8x256xf32, #tpu.memory_space<vmem>>) attributes {dimension_semantics = [#tpu.dimension_semantics<parallel>], iteration_bounds = array<i64: 1>, scalar_prefetch = 0 : i64, scratch_operands = 0 : i64, tpu.core_type = #tpu.core_type<tc>, window_params = [{transform_indices = @transform_0, window_bounds = array<i64: 8, 4>}, {pipeline_mode = #tpu.pipeline_mode<synchronous>, transform_indices = @transform_1, window_bounds = array<i64: 3, 64>}, {pipeline_mode = #tpu.pipeline_mode<synchronous>, transform_indices = @transform_2, window_bounds = array<i64: 64, 256>}, {pipeline_mode = #tpu.pipeline_mode<synchronous>, transform_indices = @transform_3, window_bounds = array<i64: 64, 256>}, {transform_indices = @transform_4, window_bounds = array<i64: 8, 256>}]} {
    %c0 = arith.constant 0 : index
    %c0_0 = arith.constant 0 : index
    %0 = vector.load %arg1[%c0, %c0_0] : memref<8x4xf32, #tpu.memory_space<vmem>>, vector<8x1xf32>
    %c0_1 = arith.constant 0 : index
    %c1 = arith.constant 1 : index
    %1 = vector.load %arg1[%c0_1, %c1] : memref<8x4xf32, #tpu.memory_space<vmem>>, vector<8x1xf32>
    %c0_2 = arith.constant 0 : index
    %c2 = arith.constant 2 : index
    %2 = vector.load %arg1[%c0_2, %c2] : memref<8x4xf32, #tpu.memory_space<vmem>>, vector<8x1xf32>
    %c0_3 = arith.constant 0 : index
    %c3 = arith.constant 3 : index
    %3 = vector.load %arg1[%c0_3, %c3] : memref<8x4xf32, #tpu.memory_space<vmem>>, vector<8x1xf32>
    %c0_4 = arith.constant 0 : index
    %c0_5 = arith.constant 0 : index
    %4 = vector.load %arg2[%c0_4, %c0_5] : memref<3x64xf32, #tpu.memory_space<vmem>>, vector<1x64xf32>
    %c1_6 = arith.constant 1 : index
    %c0_7 = arith.constant 0 : index
    %5 = vector.load %arg2[%c1_6, %c0_7] : memref<3x64xf32, #tpu.memory_space<vmem>>, vector<1x64xf32>
    %c2_8 = arith.constant 2 : index
    %c0_9 = arith.constant 0 : index
    %6 = vector.load %arg2[%c2_8, %c0_9] : memref<3x64xf32, #tpu.memory_space<vmem>>, vector<1x64xf32>
    %cst = arith.constant 0.543928266 : f32
    %7 = vector.broadcast %cst : f32 to vector<8x1xf32>
    %8 = arith.mulf %0, %7 : vector<8x1xf32>
    %9 = vector.broadcast %8 : vector<8x1xf32> to vector<8x64xf32>
    %10 = vector.broadcast %5 : vector<1x64xf32> to vector<8x64xf32>
    %11 = arith.mulf %9, %10 : vector<8x64xf32>
    %cst_10 = arith.constant 0.471404523 : f32
    %12 = vector.broadcast %cst_10 : f32 to vector<8x1xf32>
    %13 = arith.mulf %1, %12 : vector<8x1xf32>
    %14 = vector.broadcast %13 : vector<8x1xf32> to vector<8x64xf32>
    %15 = vector.broadcast %6 : vector<1x64xf32> to vector<8x64xf32>
    %16 = arith.mulf %14, %15 : vector<8x64xf32>
    %17 = arith.addf %11, %16 : vector<8x64xf32>
    %18 = vector.broadcast %4 : vector<1x64xf32> to vector<8x64xf32>
    %19 = arith.subf %18, %17 : vector<8x64xf32>
    %20 = math.erf %19 : vector<8x64xf32>
    %cst_11 = arith.constant 2.500000e-01 : f32
    %21 = vector.broadcast %cst_11 : f32 to vector<8x1xf32>
    %22 = arith.mulf %21, %2 : vector<8x1xf32>
    %23 = vector.broadcast %22 : vector<8x1xf32> to vector<8x64xf32>
    %24 = vector.broadcast %5 : vector<1x64xf32> to vector<8x64xf32>
    %25 = arith.mulf %23, %24 : vector<8x64xf32>
    %26 = vector.broadcast %6 : vector<1x64xf32> to vector<8x64xf32>
    %27 = arith.addf %25, %26 : vector<8x64xf32>
    %28 = arith.mulf %20, %27 : vector<8x64xf32>
    %c0_12 = arith.constant 0 : index
    %c0_13 = arith.constant 0 : index
    %29 = vector.load %arg3[%c0_12, %c0_13] : memref<64x256xf32, #tpu.memory_space<vmem>>, vector<64x256xf32>
    %cst_14 = arith.constant dense<0.000000e+00> : vector<8x256xf32>
    %30 = tpu.matmul %28, %29, %cst_14 {dimension_numbers = #tpu.dot_dimension_numbers<[1], [0], [0], [1], [0, 0, 1, 1], [], []>, precision = #tpu.contract_precision<fp32>} : vector<8x64xf32>, vector<64x256xf32>, vector<8x256xf32> -> vector<8x256xf32>
    %c0_15 = arith.constant 0 : index
    %c0_16 = arith.constant 0 : index
    %31 = vector.load %arg4[%c0_15, %c0_16] : memref<64x256xf32, #tpu.memory_space<vmem>>, vector<64x256xf32>
    %cst_17 = arith.constant dense<0.000000e+00> : vector<8x256xf32>
    %32 = tpu.matmul %28, %31, %cst_17 {dimension_numbers = #tpu.dot_dimension_numbers<[1], [0], [0], [1], [0, 0, 1, 1], [], []>, precision = #tpu.contract_precision<fp32>} : vector<8x64xf32>, vector<64x256xf32>, vector<8x256xf32> -> vector<8x256xf32>
    %33 = arith.mulf %30, %32 : vector<8x256xf32>
    %34 = vector.broadcast %3 : vector<8x1xf32> to vector<8x256xf32>
    %35 = arith.addf %33, %34 : vector<8x256xf32>
    %c0_18 = arith.constant 0 : index
    %c0_19 = arith.constant 0 : index
    %36 = vector.load %arg5[%c0_18, %c0_19] : memref<8x256xf32, #tpu.memory_space<vmem>>, vector<8x256xf32>
    tpu.vector_store %arg5[%c0_18, %c0_19], %35 {strides = array<i32>} : memref<8x256xf32, #tpu.memory_space<vmem>>, vector<8x256xf32>,
    return
  }
  func.func @transform_0(%arg0: i32) -> (i32, i32) {
    %c0_i32 = arith.constant 0 : i32
    %c0_i32_0 = arith.constant 0 : i32
    return %arg0, %c0_i32 : i32, i32
  }
  func.func @transform_1(%arg0: i32) -> (i32, i32) {
    %c0_i32 = arith.constant 0 : i32
    %c0_i32_0 = arith.constant 0 : i32
    %c0_i32_1 = arith.constant 0 : i32
    return %c0_i32, %c0_i32_0 : i32, i32
  }
  func.func @transform_2(%arg0: i32) -> (i32, i32) {
    %c0_i32 = arith.constant 0 : i32
    %c0_i32_0 = arith.constant 0 : i32
    %c0_i32_1 = arith.constant 0 : i32
    return %c0_i32, %c0_i32_0 : i32, i32
  }
  func.func @transform_3(%arg0: i32) -> (i32, i32) {
    %c0_i32 = arith.constant 0 : i32
    %c0_i32_0 = arith.constant 0 : i32
    %c0_i32_1 = arith.constant 0 : i32
    return %c0_i32, %c0_i32_0 : i32, i32
  }
  func.func @transform_4(%arg0: i32) -> (i32, i32) {
    %c0_i32 = arith.constant 0 : i32
    %c0_i32_0 = arith.constant 0 : i32
    return %arg0, %c0_i32 : i32, i32
  }
}

</mosaic_0001>

<llo_original>
// kernel: tpu_custom_call.1
$region0: #{tpu_custom_call.1}
  #allocation0 [shape = 'u32[]', space=smem, size = 0x4, offset = 0x4, fixed_abs, tag = 'smem constant byte address 0x4 - core index']
  #allocation1 [shape = 'u32[72,128]{1,0:T(1,128)}', space=vmem, size = 0x9000, scoped, tag = 'internal scratch']
  %s0 = inlined_call_operand.vmem [shape: f32[8,4], index: 0, kind: input, shape index: {}]
  %s1 = inlined_call_operand.vmem [shape: f32[3,64], index: 1, kind: input, shape index: {}]
  %s2 = inlined_call_operand.hbm [shape: f32[64,256], index: 2, kind: input, shape index: {}]
  %s3 = inlined_call_operand.hbm [shape: f32[64,256], index: 3, kind: input, shape index: {}]
  %s4 = inlined_call_operand.hbm [shape: f32[8,256], index: 4, kind: output, shape index: {}]
  %s5 = sld [smem:[#allocation0]]
  $region34: #{tpu_custom_call.1} parent=0
    _
  %s7 = ssub.s32 1, %s5
  %s8 = scalar_select 0, %s7, %s5
  $region1: #{tpu_custom_call.1} parent=0
    #allocation2 [shape = 'u8[65536]{0}', space=vmem, size = 0x10000, scoped, tag = 'input window, operand 2, single buffered']
    #allocation3 [shape = 's32[1]{0}', space=sflag, size = 0x4, scoped, tag = 'scoped memory for tpu_custom_call.1']
    #allocation4 [shape = 's32[1]{0}', space=sflag, size = 0x4, scoped, tag = 'scoped memory for tpu_custom_call.1']
    #allocation5 [shape = 'u8[65536]{0}', space=vmem, size = 0x10000, scoped, tag = 'input window, operand 3, single buffered']
    #allocation6 [shape = 's32[1]{0}', space=sflag, size = 0x4, scoped, tag = 'scoped memory for tpu_custom_call.1']
    #allocation7 [shape = 'u8[8192]{0}', space=vmem, size = 0x2000, scoped, tag = 'output window, operand 0, single buffered']
    %9 = vsyncpa [#allocation3], 0
    %10 = vsyncpa [#allocation6], 0
    %11 = vsyncpa [#allocation4], 0
    // Predicated region
    $region2: #{tpu_custom_call.1} parent=1 // pred_check
      _
    $region3: #{tpu_custom_call.1} parent=1 // pred_check_branch
      %13 = sbr.rel (0) target = $region5
    $region4: #{tpu_custom_call.1} parent=1 // pred_region
      _
    $region5: #{tpu_custom_call.1} parent=1 // pred_fallthru
      _
    // Predicated region
    $region6: #{tpu_custom_call.1} parent=1 // pred_check
      _
    $region7: #{tpu_custom_call.1} parent=1 // pred_check_branch
      %15 = sbr.rel (0) target = $region9
    $region8: #{tpu_custom_call.1} parent=1 // pred_region
      _
    $region9: #{tpu_custom_call.1} parent=1 // pred_fallthru
      _
    // Predicated region
    $region10: #{tpu_custom_call.1} parent=1 // pred_check
      _
    $region11: #{tpu_custom_call.1} parent=1 // pred_check_branch
      %17 = sbr.rel (0) target = $region13
    $region12: #{tpu_custom_call.1} parent=1 // pred_region
      %19 = vsyncadd [#allocation3], 0
      %s20 = sshll.u32 %s2, 4
      %s21 = int_to_ptr.hbm [resolvable:$true] %s20
      %s22 = sshll.u32 [#allocation2], 4
      %s23 = int_to_ptr.vmem [resolvable:$true] %s22
      %28 = dma.hbm_to_vmem [thread:$0]  %s21, 2048, %s23, [#allocation3], 256, 256, 16
    $region13: #{tpu_custom_call.1} parent=1 // pred_fallthru
      _
    // Predicated region
    $region14: #{tpu_custom_call.1} parent=1 // pred_check
      _
    $region15: #{tpu_custom_call.1} parent=1 // pred_check_branch
      %30 = sbr.rel (0) target = $region17
    $region16: #{tpu_custom_call.1} parent=1 // pred_region
      %32 = vsyncadd [#allocation6], 0
      %s33 = sshll.u32 %s3, 4
      %s34 = int_to_ptr.hbm [resolvable:$true] %s33
      %s35 = sshll.u32 [#allocation5], 4
      %s36 = int_to_ptr.vmem [resolvable:$true] %s35
      %41 = dma.hbm_to_vmem [thread:$0]  %s34, 2048, %s36, [#allocation6], 256, 256, 16
    $region17: #{tpu_custom_call.1} parent=1 // pred_fallthru
      _
    // Predicated region
    $region18: #{tpu_custom_call.1} parent=1 // pred_check
      _
    $region19: #{tpu_custom_call.1} parent=1 // pred_check_branch
      %43 = sbr.rel (0) target = $region21
    $region20: #{tpu_custom_call.1} parent=1 // pred_region
      %45 = dma.done [#allocation3], 2048
    $region21: #{tpu_custom_call.1} parent=1 // pred_fallthru
      _
    // Predicated region
    $region22: #{tpu_custom_call.1} parent=1 // pred_check
      _
    $region23: #{tpu_custom_call.1} parent=1 // pred_check_branch
      %47 = sbr.rel (0) target = $region25
    $region24: #{tpu_custom_call.1} parent=1 // pred_region
      %49 = dma.done [#allocation6], 2048
    $region25: #{tpu_custom_call.1} parent=1 // pred_fallthru
      _
    %v50 = vld [vmem:[%s0] sm:$0xff]
    %v51 = vld [vmem:[%s1] sm:$0x1]
    %v52 = vld [vmem:[%s1 + $0x1] sm:$0x1]
    %v53 = vld [vmem:[%s1 + $0x2] sm:$0x1]
    %v54 = vmul.f32 %v50, 0.54392827
    %56 = vset.pattern.permute.xlu0 0
    %57 = vperm.xlu0 %56, %v54
    %v58 = vpop.permute.xlu0 %57
    %v60 = vperm.slane %v52, 0
    %v61 = vmul.f32 %v58, %v60
    %v62 = vmul.f32 %v50, 0.47140452
    %64 = vset.pattern.permute.xlu0 1
    %65 = vperm.xlu0 %64, %v62
    %v66 = vpop.permute.xlu0 %65
    %v68 = vperm.slane %v53, 0
    %v69 = vmul.f32 %v66, %v68
    %v70 = vadd.f32 %v61, %v69
    %v71 = vperm.slane %v51, 0
    %v72 = vsub.f32 %v71, %v70
    %v73 = vmul.f32 %v72, %v72
    %v74 = vmin.f32 16.0, %v73
    %v75 = vmul.f32 %v74, 2.1237322e-06
    %v76 = vadd.f32 %v75, 0.00028619796
    %v77 = vmul.f32 %v74, %v76
    %v78 = vadd.f32 %v77, 0.0036580483
    %v79 = vmul.f32 %v74, %v78
    %v80 = vadd.f32 %v79, 0.05243302
    %v81 = vmul.f32 %v74, %v80
    %v82 = vadd.f32 %v81, 0.18741608
    %v83 = vmul.f32 %v74, %v82
    %v84 = vadd.f32 %v83, 1.1283791
    %v85 = vmul.f32 %v72, %v84
    %v86 = vmul.f32 %v74, 3.8918573e-05
    %v87 = vadd.f32 %v86, 0.001143296
    %v88 = vmul.f32 %v74, %v87
    %v89 = vadd.f32 %v88, 0.014752088
    %v90 = vmul.f32 %v74, %v89
    %v91 = vadd.f32 %v90, 0.112945676
    %v92 = vmul.f32 %v74, %v91
    %v93 = vadd.f32 %v92, 0.4994258
    %v94 = vmul.f32 %v74, %v93
    %v95 = vadd.f32 %v94, 1.0
    %v96 = vrcp.pop %v95
    %v97 = vmul.f32 %v95, %v96
    %v98 = vsub.f32 1.0, %v97
    %v99 = vmul.f32 %v96, %v98
    %v100 = vadd.f32 %v96, %v99
    %vm101 = vweird.f32 %v95
    %vm102 = vweird.f32 %v96
    %vm103 = vmor %vm101, %vm102
    %v104 = vsel %vm103, %v96, %v100
    %v105 = vand.u32 2147483647, %v95
    %vm106 = vcmp.eq.f32.partialorder %v105, 8.507059e+37
    %v107 = vand.u32 %v95, 2147483648
    %v108 = vor.u32 1.1754944e-38, %v107
    %v109 = vsel %vm106, %v108, %v104
    %v110 = vmul.f32 %v85, %v109
    %v111 = vmin.f32 %v110, 1.0
    %v112 = vmax.f32 %v111, -1.0
    %v113 = vmul.f32 %v50, 0.25
    %115 = vset.pattern.permute.xlu0 2
    %116 = vperm.xlu0 %115, %v113
    %v117 = vpop.permute.xlu0 %116
    %v119 = vmul.f32 %v117, %v60
    %v120 = vadd.f32 %v119, %v68
    %v121 = vmul.f32 %v112, %v120
    %v122 = vld [vmem:[#allocation2] sm:$0xff]
    %v123 = vld [vmem:[#allocation2 + $0x8] sm:$0xff]
    %v124 = vld [vmem:[#allocation2 + $0x10] sm:$0xff]
    %v125 = vld [vmem:[#allocation2 + $0x18] sm:$0xff]
    %v126 = vld [vmem:[#allocation2 + $0x20] sm:$0xff]
    %v127 = vld [vmem:[#allocation2 + $0x28] sm:$0xff]
    %v128 = vld [vmem:[#allocation2 + $0x30] sm:$0xff]
    %v129 = vld [vmem:[#allocation2 + $0x38] sm:$0xff]
    %v130 = vld [vmem:[#allocation2 + $0x40] sm:$0xff]
    %v131 = vld [vmem:[#allocation2 + $0x48] sm:$0xff]
    %v132 = vld [vmem:[#allocation2 + $0x50] sm:$0xff]
    %v133 = vld [vmem:[#allocation2 + $0x58] sm:$0xff]
    %v134 = vld [vmem:[#allocation2 + $0x60] sm:$0xff]
    %v135 = vld [vmem:[#allocation2 + $0x68] sm:$0xff]
    %v136 = vld [vmem:[#allocation2 + $0x70] sm:$0xff]
    %v137 = vld [vmem:[#allocation2 + $0x78] sm:$0xff]
    %vm138 = vcmask 523264
    %v140 = vsel %vm138, %v121, 0
    %142 = vmatpush.msra.mxu0 0.0
    %143 = vmatpush.msra.mxu0 0.0
    %144 = vmatpush.msra.mxu0 0.0
    %145 = vmatpush.msra.mxu0 0.0
    %146 = vmatpush.msra.mxu0 0.0
    %147 = vmatpush.msra.mxu0 0.0
    %148 = vmatpush.msra.mxu0 0.0
    %149 = vmatpush.msra.mxu0 0.0
    %v150 = vand.u32 %v136, 4294901760
    %151 = vmatpush.msra.mxu0 %v150
    %v152 = vand.u32 %v134, 4294901760
    %153 = vmatpush.msra.mxu0 %v152
    %v154 = vand.u32 %v132, 4294901760
    %155 = vmatpush.msra.mxu0 %v154
    %v156 = vand.u32 %v130, 4294901760
    %157 = vmatpush.msra.mxu0 %v156
    %v158 = vand.u32 %v128, 4294901760
    %159 = vmatpush.msra.mxu0 %v158
    %v160 = vand.u32 %v126, 4294901760
    %161 = vmatpush.msra.mxu0 %v160
    %v162 = vand.u32 %v124, 4294901760
    %163 = vmatpush.msra.mxu0 %v162
    %v164 = vand.u32 %v122, 4294901760
    %165 = vmatpush.msra.mxu0 %v164
    %v166 = vand.u32 %v140, 4294901760
    %v167 = vsub.f32 %v140, %v166
    %v168 = vand.u32 %v167, 4294901760
    %v169 = vsub.f32 %v167, %v168
    %v170 = vand.u32 %v169, 4294901760
    %171 = vmatmul.f32.gmra.mxu0 %v170
    %v172 = vpop.f32.mrf.mxu0
    %v173 = vadd.f32 0.0, %v172
    %174 = vdwg.mxu0
    %175 = vmatpush.msra.mxu0 0.0
    %176 = vmatpush.msra.mxu0 0.0
    %177 = vmatpush.msra.mxu0 0.0
    %178 = vmatpush.msra.mxu0 0.0
    %179 = vmatpush.msra.mxu0 0.0
    %180 = vmatpush.msra.mxu0 0.0
    %181 = vmatpush.msra.mxu0 0.0
    %182 = vmatpush.msra.mxu0 0.0
    %v183 = vand.u32 %v136, 4294901760
    %v184 = vsub.f32 %v136, %v183
    %v185 = vand.u32 %v184, 4294901760
    %v186 = vsub.f32 %v184, %v185
    %v187 = vand.u32 %v186, 4294901760
    %188 = vmatpush.msra.mxu0 %v187
    %v189 = vand.u32 %v134, 4294901760
    %v190 = vsub.f32 %v134, %v189
    %v191 = vand.u32 %v190, 4294901760
    %v192 = vsub.f32 %v190, %v191
    %v193 = vand.u32 %v192, 4294901760
    %194 = vmatpush.msra.mxu0 %v193
    %v195 = vand.u32 %v132, 4294901760
    %v196 = vsub.f32 %v132, %v195
    %v197 = vand.u32 %v196, 4294901760
    %v198 = vsub.f32 %v196, %v197
    %v199 = vand.u32 %v198, 4294901760
    %200 = vmatpush.msra.mxu0 %v199
    %v201 = vand.u32 %v130, 4294901760
    %v202 = vsub.f32 %v130, %v201
    %v203 = vand.u32 %v202, 4294901760
    %v204 = vsub.f32 %v202, %v203
    %v205 = vand.u32 %v204, 4294901760
    %206 = vmatpush.msra.mxu0 %v205
    %v207 = vand.u32 %v128, 4294901760
    %v208 = vsub.f32 %v128, %v207
    %v209 = vand.u32 %v208, 4294901760
    %v210 = vsub.f32 %v208, %v209
    %v211 = vand.u32 %v210, 4294901760
    %212 = vmatpush.msra.mxu0 %v211
    %v213 = vand.u32 %v126, 4294901760
    %v214 = vsub.f32 %v126, %v213
    %v215 = vand.u32 %v214, 4294901760
    %v216 = vsub.f32 %v214, %v215
    %v217 = vand.u32 %v216, 4294901760
    %218 = vmatpush.msra.mxu0 %v217
    %v219 = vand.u32 %v124, 4294901760
    %v220 = vsub.f32 %v124, %v219
    %v221 = vand.u32 %v220, 4294901760
    %v222 = vsub.f32 %v220, %v221
    %v223 = vand.u32 %v222, 4294901760
    %224 = vmatpush.msra.mxu0 %v223
    %v225 = vand.u32 %v122, 4294901760
    %v226 = vsub.f32 %v122, %v225
    %v227 = vand.u32 %v226, 4294901760
    %v228 = vsub.f32 %v226, %v227
    %v229 = vand.u32 %v228, 4294901760
    %230 = vmatpush.msra.mxu0 %v229
    %v231 = vand.u32 %v140, 4294901760
    %232 = vmatmul.f32.gmra.mxu0 %v231
    %v233 = vpop.f32.mrf.mxu0
    %v234 = vadd.f32 %v173, %v233
    %235 = vdwg.mxu0
    %236 = vmatpush.msra.mxu0 0.0
    %237 = vmatpush.msra.mxu0 0.0
    %238 = vmatpush.msra.mxu0 0.0
    %239 = vmatpush.msra.mxu0 0.0
    %240 = vmatpush.msra.mxu0 0.0
    %241 = vmatpush.msra.mxu0 0.0
    %242 = vmatpush.msra.mxu0 0.0
    %243 = vmatpush.msra.mxu0 0.0
    %v244 = vand.u32 %v136, 4294901760
    %v245 = vsub.f32 %v136, %v244
    %246 = vmatpush.msra.mxu0 %v245
    %v247 = vand.u32 %v134, 4294901760
    %v248 = vsub.f32 %v134, %v247
    %249 = vmatpush.msra.mxu0 %v248
    %v250 = vand.u32 %v132, 4294901760
    %v251 = vsub.f32 %v132, %v250
    %252 = vmatpush.msra.mxu0 %v251
    %v253 = vand.u32 %v130, 4294901760
    %v254 = vsub.f32 %v130, %v253
    %255 = vmatpush.msra.mxu0 %v254
    %v256 = vand.u32 %v128, 4294901760
    %v257 = vsub.f32 %v128, %v256
    %258 = vmatpush.msra.mxu0 %v257
    %v259 = vand.u32 %v126, 4294901760
    %v260 = vsub.f32 %v126, %v259
    %261 = vmatpush.msra.mxu0 %v260
    %v262 = vand.u32 %v124, 4294901760
    %v263 = vsub.f32 %v124, %v262
    %264 = vmatpush.msra.mxu0 %v263
    %v265 = vand.u32 %v122, 4294901760
    %v266 = vsub.f32 %v122, %v265
    %267 = vmatpush.msra.mxu0 %v266
    %v268 = vand.u32 %v140, 4294901760
    %v269 = vsub.f32 %v140, %v268
    %270 = vmatmul.f32.gmra.mxu0 %v269
    %v271 = vpop.f32.mrf.mxu0
    %v272 = vadd.f32 %v234, %v271
    %273 = vdwg.mxu0
    %274 = vmatpush.msra.mxu0 0.0
    %275 = vmatpush.msra.mxu0 0.0
    %276 = vmatpush.msra.mxu0 0.0
    %277 = vmatpush.msra.mxu0 0.0
    %278 = vmatpush.msra.mxu0 0.0
    %279 = vmatpush.msra.mxu0 0.0
    %280 = vmatpush.msra.mxu0 0.0
    %281 = vmatpush.msra.mxu0 0.0
    %v282 = vand.u32 %v136, 4294901760
    %283 = vmatpush.msra.mxu0 %v282
    %v284 = vand.u32 %v134, 4294901760
    %285 = vmatpush.msra.mxu0 %v284
    %v286 = vand.u32 %v132, 4294901760
    %287 = vmatpush.msra.mxu0 %v286
    %v288 = vand.u32 %v130, 4294901760
    %289 = vmatpush.msra.mxu0 %v288
    %v290 = vand.u32 %v128, 4294901760
    %291 = vmatpush.msra.mxu0 %v290
    %v292 = vand.u32 %v126, 4294901760
    %293 = vmatpush.msra.mxu0 %v292
    %v294 = vand.u32 %v124, 4294901760
    %295 = vmatpush.msra.mxu0 %v294
    %v296 = vand.u32 %v122, 4294901760
    %297 = vmatpush.msra.mxu0 %v296
    %v298 = vand.u32 %v140, 4294901760
    %v299 = vsub.f32 %v140, %v298
    %v300 = vand.u32 %v299, 4294901760
    %301 = vmatmul.f32.gmra.mxu0 %v300
    %v302 = vpop.f32.mrf.mxu0
    %v303 = vadd.f32 %v272, %v302
    %304 = vdwg.mxu0
    %305 = vmatpush.msra.mxu0 0.0
    %306 = vmatpush.msra.mxu0 0.0
    %307 = vmatpush.msra.mxu0 0.0
    %308 = vmatpush.msra.mxu0 0.0
    %309 = vmatpush.msra.mxu0 0.0
    %310 = vmatpush.msra.mxu0 0.0
    %311 = vmatpush.msra.mxu0 0.0
    %312 = vmatpush.msra.mxu0 0.0
    %v313 = vand.u32 %v136, 4294901760
    %v314 = vsub.f32 %v136, %v313
    %v315 = vand.u32 %v314, 4294901760
    %316 = vmatpush.msra.mxu0 %v315
    %v317 = vand.u32 %v134, 4294901760
    %v318 = vsub.f32 %v134, %v317
    %v319 = vand.u32 %v318, 4294901760
    %320 = vmatpush.msra.mxu0 %v319
    %v321 = vand.u32 %v132, 4294901760
    %v322 = vsub.f32 %v132, %v321
    %v323 = vand.u32 %v322, 4294901760
    %324 = vmatpush.msra.mxu0 %v323
    %v325 = vand.u32 %v130, 4294901760
    %v326 = vsub.f32 %v130, %v325
    %v327 = vand.u32 %v326, 4294901760
    %328 = vmatpush.msra.mxu0 %v327
    %v329 = vand.u32 %v128, 4294901760
    %v330 = vsub.f32 %v128, %v329
    %v331 = vand.u32 %v330, 4294901760
    %332 = vmatpush.msra.mxu0 %v331
    %v333 = vand.u32 %v126, 4294901760
    %v334 = vsub.f32 %v126, %v333
    %v335 = vand.u32 %v334, 4294901760
    %336 = vmatpush.msra.mxu0 %v335
    %v337 = vand.u32 %v124, 4294901760
    %v338 = vsub.f32 %v124, %v337
    %v339 = vand.u32 %v338, 4294901760
    %340 = vmatpush.msra.mxu0 %v339
    %v341 = vand.u32 %v122, 4294901760
    %v342 = vsub.f32 %v122, %v341
    %v343 = vand.u32 %v342, 4294901760
    %344 = vmatpush.msra.mxu0 %v343
    %v345 = vand.u32 %v140, 4294901760
    %346 = vmatmul.f32.gmra.mxu0 %v345
    %v347 = vpop.f32.mrf.mxu0
    %v348 = vadd.f32 %v303, %v347
    %349 = vdwg.mxu0
    %350 = vmatpush.msra.mxu0 0.0
    %351 = vmatpush.msra.mxu0 0.0
    %352 = vmatpush.msra.mxu0 0.0
    %353 = vmatpush.msra.mxu0 0.0
    %354 = vmatpush.msra.mxu0 0.0
    %355 = vmatpush.msra.mxu0 0.0
    %356 = vmatpush.msra.mxu0 0.0
    %357 = vmatpush.msra.mxu0 0.0
    %v358 = vand.u32 %v136, 4294901760
    %359 = vmatpush.msra.mxu0 %v358
    %v360 = vand.u32 %v134, 4294901760
    %361 = vmatpush.msra.mxu0 %v360
    %v362 = vand.u32 %v132, 4294901760
    %363 = vmatpush.msra.mxu0 %v362
    %v364 = vand.u32 %v130, 4294901760
    %365 = vmatpush.msra.mxu0 %v364
    %v366 = vand.u32 %v128, 4294901760
    %367 = vmatpush.msra.mxu0 %v366
    %v368 = vand.u32 %v126, 4294901760
    %369 = vmatpush.msra.mxu0 %v368
    %v370 = vand.u32 %v124, 4294901760
    %371 = vmatpush.msra.mxu0 %v370
    %v372 = vand.u32 %v122, 4294901760
    %373 = vmatpush.msra.mxu0 %v372
    %v374 = vand.u32 %v140, 4294901760
    %375 = vmatmul.f32.gmra.mxu0 %v374
    %v376 = vpop.f32.mrf.mxu0
    %v377 = vadd.f32 %v348, %v376
    %378 = vdwg.mxu0
    %379 = vmatpush.msra.mxu0 0.0
    %380 = vmatpush.msra.mxu0 0.0
    %381 = vmatpush.msra.mxu0 0.0
    %382 = vmatpush.msra.mxu0 0.0
    %383 = vmatpush.msra.mxu0 0.0
    %384 = vmatpush.msra.mxu0 0.0
    %385 = vmatpush.msra.mxu0 0.0
    %386 = vmatpush.msra.mxu0 0.0
    %v387 = vand.u32 %v137, 4294901760
    %388 = vmatpush.msra.mxu0 %v387
    %v389 = vand.u32 %v135, 4294901760
    %390 = vmatpush.msra.mxu0 %v389
    %v391 = vand.u32 %v133, 4294901760
    %392 = vmatpush.msra.mxu0 %v391
    %v393 = vand.u32 %v131, 4294901760
    %394 = vmatpush.msra.mxu0 %v393
    %v395 = vand.u32 %v129, 4294901760
    %396 = vmatpush.msra.mxu0 %v395
    %v397 = vand.u32 %v127, 4294901760
    %398 = vmatpush.msra.mxu0 %v397
    %v399 = vand.u32 %v125, 4294901760
    %400 = vmatpush.msra.mxu0 %v399
    %v401 = vand.u32 %v123, 4294901760
    %402 = vmatpush.msra.mxu0 %v401
    %v403 = vand.u32 %v140, 4294901760
    %v404 = vsub.f32 %v140, %v403
    %v405 = vand.u32 %v404, 4294901760
    %v406 = vsub.f32 %v404, %v405
    %v407 = vand.u32 %v406, 4294901760
    %408 = vmatmul.f32.gmra.mxu0 %v407
    %v409 = vpop.f32.mrf.mxu0
    %v410 = vadd.f32 0.0, %v409
    %411 = vdwg.mxu0
    %412 = vmatpush.msra.mxu0 0.0
    %413 = vmatpush.msra.mxu0 0.0
    %414 = vmatpush.msra.mxu0 0.0
    %415 = vmatpush.msra.mxu0 0.0
    %416 = vmatpush.msra.mxu0 0.0
    %417 = vmatpush.msra.mxu0 0.0
    %418 = vmatpush.msra.mxu0 0.0
    %419 = vmatpush.msra.mxu0 0.0
    %v420 = vand.u32 %v137, 4294901760
    %v421 = vsub.f32 %v137, %v420
    %v422 = vand.u32 %v421, 4294901760
    %v423 = vsub.f32 %v421, %v422
    %v424 = vand.u32 %v423, 4294901760
    %425 = vmatpush.msra.mxu0 %v424
    %v426 = vand.u32 %v135, 4294901760
    %v427 = vsub.f32 %v135, %v426
    %v428 = vand.u32 %v427, 4294901760
    %v429 = vsub.f32 %v427, %v428
    %v430 = vand.u32 %v429, 4294901760
    %431 = vmatpush.msra.mxu0 %v430
    %v432 = vand.u32 %v133, 4294901760
    %v433 = vsub.f32 %v133, %v432
    %v434 = vand.u32 %v433, 4294901760
    %v435 = vsub.f32 %v433, %v434
    %v436 = vand.u32 %v435, 4294901760
    %437 = vmatpush.msra.mxu0 %v436
    %v438 = vand.u32 %v131, 4294901760
    %v439 = vsub.f32 %v131, %v438
    %v440 = vand.u32 %v439, 4294901760
    %v441 = vsub.f32 %v439, %v440
    %v442 = vand.u32 %v441, 4294901760
    %443 = vmatpush.msra.mxu0 %v442
    %v444 = vand.u32 %v129, 4294901760
    %v445 = vsub.f32 %v129, %v444
    %v446 = vand.u32 %v445, 4294901760
    %v447 = vsub.f32 %v445, %v446
    %v448 = vand.u32 %v447, 4294901760
    %449 = vmatpush.msra.mxu0 %v448
    %v450 = vand.u32 %v127, 4294901760
    %v451 = vsub.f32 %v127, %v450
    %v452 = vand.u32 %v451, 4294901760
    %v453 = vsub.f32 %v451, %v452
    %v454 = vand.u32 %v453, 4294901760
    %455 = vmatpush.msra.mxu0 %v454
    %v456 = vand.u32 %v125, 4294901760
    %v457 = vsub.f32 %v125, %v456
    %v458 = vand.u32 %v457, 4294901760
    %v459 = vsub.f32 %v457, %v458
    %v460 = vand.u32 %v459, 4294901760
    %461 = vmatpush.msra.mxu0 %v460
    %v462 = vand.u32 %v123, 4294901760
    %v463 = vsub.f32 %v123, %v462
    %v464 = vand.u32 %v463, 4294901760
    %v465 = vsub.f32 %v463, %v464
    %v466 = vand.u32 %v465, 4294901760
    %467 = vmatpush.msra.mxu0 %v466
    %v468 = vand.u32 %v140, 4294901760
    %469 = vmatmul.f32.gmra.mxu0 %v468
    %v470 = vpop.f32.mrf.mxu0
    %v471 = vadd.f32 %v410, %v470
    %472 = vdwg.mxu0
    %473 = vmatpush.msra.mxu0 0.0
    %474 = vmatpush.msra.mxu0 0.0
    %475 = vmatpush.msra.mxu0 0.0
    %476 = vmatpush.msra.mxu0 0.0
    %477 = vmatpush.msra.mxu0 0.0
    %478 = vmatpush.msra.mxu0 0.0
    %479 = vmatpush.msra.mxu0 0.0
    %480 = vmatpush.msra.mxu0 0.0
    %v481 = vand.u32 %v137, 4294901760
    %v482 = vsub.f32 %v137, %v481
    %483 = vmatpush.msra.mxu0 %v482
    %v484 = vand.u32 %v135, 4294901760
    %v485 = vsub.f32 %v135, %v484
    %486 = vmatpush.msra.mxu0 %v485
    %v487 = vand.u32 %v133, 4294901760
    %v488 = vsub.f32 %v133, %v487
    %489 = vmatpush.msra.mxu0 %v488
    %v490 = vand.u32 %v131, 4294901760
    %v491 = vsub.f32 %v131, %v490
    %492 = vmatpush.msra.mxu0 %v491
    %v493 = vand.u32 %v129, 4294901760
    %v494 = vsub.f32 %v129, %v493
    %495 = vmatpush.msra.mxu0 %v494
    %v496 = vand.u32 %v127, 4294901760
    %v497 = vsub.f32 %v127, %v496
    %498 = vmatpush.msra.mxu0 %v497
    %v499 = vand.u32 %v125, 4294901760
    %v500 = vsub.f32 %v125, %v499
    %501 = vmatpush.msra.mxu0 %v500
    %v502 = vand.u32 %v123, 4294901760
    %v503 = vsub.f32 %v123, %v502
    %504 = vmatpush.msra.mxu0 %v503
    %v505 = vand.u32 %v140, 4294901760
    %v506 = vsub.f32 %v140, %v505
    %507 = vmatmul.f32.gmra.mxu0 %v506
    %v508 = vpop.f32.mrf.mxu0
    %v509 = vadd.f32 %v471, %v508
    %510 = vdwg.mxu0
    %511 = vmatpush.msra.mxu0 0.0
    %512 = vmatpush.msra.mxu0 0.0
    %513 = vmatpush.msra.mxu0 0.0
    %514 = vmatpush.msra.mxu0 0.0
    %515 = vmatpush.msra.mxu0 0.0
    %516 = vmatpush.msra.mxu0 0.0
    %517 = vmatpush.msra.mxu0 0.0
    %518 = vmatpush.msra.mxu0 0.0
    %v519 = vand.u32 %v137, 4294901760
    %520 = vmatpush.msra.mxu0 %v519
    %v521 = vand.u32 %v135, 4294901760
    %522 = vmatpush.msra.mxu0 %v521
    %v523 = vand.u32 %v133, 4294901760
    %524 = vmatpush.msra.mxu0 %v523
    %v525 = vand.u32 %v131, 4294901760
    %526 = vmatpush.msra.mxu0 %v525
    %v527 = vand.u32 %v129, 4294901760
    %528 = vmatpush.msra.mxu0 %v527
    %v529 = vand.u32 %v127, 4294901760
    %530 = vmatpush.msra.mxu0 %v529
    %v531 = vand.u32 %v125, 4294901760
    %532 = vmatpush.msra.mxu0 %v531
    %v533 = vand.u32 %v123, 4294901760
    %534 = vmatpush.msra.mxu0 %v533
    %v535 = vand.u32 %v140, 4294901760
    %v536 = vsub.f32 %v140, %v535
    %v537 = vand.u32 %v536, 4294901760
    %538 = vmatmul.f32.gmra.mxu0 %v537
    %v539 = vpop.f32.mrf.mxu0
    %v540 = vadd.f32 %v509, %v539
    %541 = vdwg.mxu0
    %542 = vmatpush.msra.mxu0 0.0
    %543 = vmatpush.msra.mxu0 0.0
    %544 = vmatpush.msra.mxu0 0.0
    %545 = vmatpush.msra.mxu0 0.0
    %546 = vmatpush.msra.mxu0 0.0
    %547 = vmatpush.msra.mxu0 0.0
    %548 = vmatpush.msra.mxu0 0.0
    %549 = vmatpush.msra.mxu0 0.0
    %v550 = vand.u32 %v137, 4294901760
    %v551 = vsub.f32 %v137, %v550
    %v552 = vand.u32 %v551, 4294901760
    %553 = vmatpush.msra.mxu0 %v552
    %v554 = vand.u32 %v135, 4294901760
    %v555 = vsub.f32 %v135, %v554
    %v556 = vand.u32 %v555, 4294901760
    %557 = vmatpush.msra.mxu0 %v556
    %v558 = vand.u32 %v133, 4294901760
    %v559 = vsub.f32 %v133, %v558
    %v560 = vand.u32 %v559, 4294901760
    %561 = vmatpush.msra.mxu0 %v560
    %v562 = vand.u32 %v131, 4294901760
    %v563 = vsub.f32 %v131, %v562
    %v564 = vand.u32 %v563, 4294901760
    %565 = vmatpush.msra.mxu0 %v564
    %v566 = vand.u32 %v129, 4294901760
    %v567 = vsub.f32 %v129, %v566
    %v568 = vand.u32 %v567, 4294901760
    %569 = vmatpush.msra.mxu0 %v568
    %v570 = vand.u32 %v127, 4294901760
    %v571 = vsub.f32 %v127, %v570
    %v572 = vand.u32 %v571, 4294901760
    %573 = vmatpush.msra.mxu0 %v572
    %v574 = vand.u32 %v125, 4294901760
    %v575 = vsub.f32 %v125, %v574
    %v576 = vand.u32 %v575, 4294901760
    %577 = vmatpush.msra.mxu0 %v576
    %v578 = vand.u32 %v123, 4294901760
    %v579 = vsub.f32 %v123, %v578
    %v580 = vand.u32 %v579, 4294901760
    %581 = vmatpush.msra.mxu0 %v580
    %v582 = vand.u32 %v140, 4294901760
    %583 = vmatmul.f32.gmra.mxu0 %v582
    %v584 = vpop.f32.mrf.mxu0
    %v585 = vadd.f32 %v540, %v584
    %586 = vdwg.mxu0
    %587 = vmatpush.msra.mxu0 0.0
    %588 = vmatpush.msra.mxu0 0.0
    %589 = vmatpush.msra.mxu0 0.0
    %590 = vmatpush.msra.mxu0 0.0
    %591 = vmatpush.msra.mxu0 0.0
    %592 = vmatpush.msra.mxu0 0.0
    %593 = vmatpush.msra.mxu0 0.0
    %594 = vmatpush.msra.mxu0 0.0
    %v595 = vand.u32 %v137, 4294901760
    %596 = vmatpush.msra.mxu0 %v595
    %v597 = vand.u32 %v135, 4294901760
    %598 = vmatpush.msra.mxu0 %v597
    %v599 = vand.u32 %v133, 4294901760
    %600 = vmatpush.msra.mxu0 %v599
    %v601 = vand.u32 %v131, 4294901760
    %602 = vmatpush.msra.mxu0 %v601
    %v603 = vand.u32 %v129, 4294901760
    %604 = vmatpush.msra.mxu0 %v603
    %v605 = vand.u32 %v127, 4294901760
    %606 = vmatpush.msra.mxu0 %v605
    %v607 = vand.u32 %v125, 4294901760
    %608 = vmatpush.msra.mxu0 %v607
    %v609 = vand.u32 %v123, 4294901760
    %610 = vmatpush.msra.mxu0 %v609
    %v611 = vand.u32 %v140, 4294901760
    %612 = vmatmul.f32.gmra.mxu0 %v611
    %v613 = vpop.f32.mrf.mxu0
    %v614 = vadd.f32 %v585, %v613
    %615 = vdwg.mxu0
    %v616 = vld [vmem:[#allocation5] sm:$0xff]
    %v617 = vld [vmem:[#allocation5 + $0x8] sm:$0xff]
    %v618 = vld [vmem:[#allocation5 + $0x10] sm:$0xff]
    %v619 = vld [vmem:[#allocation5 + $0x18] sm:$0xff]
    %v620 = vld [vmem:[#allocation5 + $0x20] sm:$0xff]
    %v621 = vld [vmem:[#allocation5 + $0x28] sm:$0xff]
    %v622 = vld [vmem:[#allocation5 + $0x30] sm:$0xff]
    %v623 = vld [vmem:[#allocation5 + $0x38] sm:$0xff]
    %v624 = vld [vmem:[#allocation5 + $0x40] sm:$0xff]
    %v625 = vld [vmem:[#allocation5 + $0x48] sm:$0xff]
    %v626 = vld [vmem:[#allocation5 + $0x50] sm:$0xff]
    %v627 = vld [vmem:[#allocation5 + $0x58] sm:$0xff]
    %v628 = vld [vmem:[#allocation5 + $0x60] sm:$0xff]
    %v629 = vld [vmem:[#allocation5 + $0x68] sm:$0xff]
    %v630 = vld [vmem:[#allocation5 + $0x70] sm:$0xff]
    %v631 = vld [vmem:[#allocation5 + $0x78] sm:$0xff]
    %632 = vmatpush.msra.mxu0 0.0
    %633 = vmatpush.msra.mxu0 0.0
    %634 = vmatpush.msra.mxu0 0.0
    %635 = vmatpush.msra.mxu0 0.0
    %636 = vmatpush.msra.mxu0 0.0
    %637 = vmatpush.msra.mxu0 0.0
    %638 = vmatpush.msra.mxu0 0.0
    %639 = vmatpush.msra.mxu0 0.0
    %v640 = vand.u32 %v630, 4294901760
    %641 = vmatpush.msra.mxu0 %v640
    %v642 = vand.u32 %v628, 4294901760
    %643 = vmatpush.msra.mxu0 %v642
    %v644 = vand.u32 %v626, 4294901760
    %645 = vmatpush.msra.mxu0 %v644
    %v646 = vand.u32 %v624, 4294901760
    %647 = vmatpush.msra.mxu0 %v646
    %v648 = vand.u32 %v622, 4294901760
    %649 = vmatpush.msra.mxu0 %v648
    %v650 = vand.u32 %v620, 4294901760
    %651 = vmatpush.msra.mxu0 %v650
    %v652 = vand.u32 %v618, 4294901760
    %653 = vmatpush.msra.mxu0 %v652
    %v654 = vand.u32 %v616, 4294901760
    %655 = vmatpush.msra.mxu0 %v654
    %v656 = vand.u32 %v140, 4294901760
    %v657 = vsub.f32 %v140, %v656
    %v658 = vand.u32 %v657, 4294901760
    %v659 = vsub.f32 %v657, %v658
    %v660 = vand.u32 %v659, 4294901760
    %661 = vmatmul.f32.gmra.mxu0 %v660
    %v662 = vpop.f32.mrf.mxu0
    %v663 = vadd.f32 0.0, %v662
    %664 = vdwg.mxu0
    %665 = vmatpush.msra.mxu0 0.0
    %666 = vmatpush.msra.mxu0 0.0
    %667 = vmatpush.msra.mxu0 0.0
    %668 = vmatpush.msra.mxu0 0.0
    %669 = vmatpush.msra.mxu0 0.0
    %670 = vmatpush.msra.mxu0 0.0
    %671 = vmatpush.msra.mxu0 0.0
    %672 = vmatpush.msra.mxu0 0.0
    %v673 = vand.u32 %v630, 4294901760
    %v674 = vsub.f32 %v630, %v673
    %v675 = vand.u32 %v674, 4294901760
    %v676 = vsub.f32 %v674, %v675
    %v677 = vand.u32 %v676, 4294901760
    %678 = vmatpush.msra.mxu0 %v677
    %v679 = vand.u32 %v628, 4294901760
    %v680 = vsub.f32 %v628, %v679
    %v681 = vand.u32 %v680, 4294901760
    %v682 = vsub.f32 %v680, %v681
    %v683 = vand.u32 %v682, 4294901760
    %684 = vmatpush.msra.mxu0 %v683
    %v685 = vand.u32 %v626, 4294901760
    %v686 = vsub.f32 %v626, %v685
    %v687 = vand.u32 %v686, 4294901760
    %v688 = vsub.f32 %v686, %v687
    %v689 = vand.u32 %v688, 4294901760
    %690 = vmatpush.msra.mxu0 %v689
    %v691 = vand.u32 %v624, 4294901760
    %v692 = vsub.f32 %v624, %v691
    %v693 = vand.u32 %v692, 4294901760
    %v694 = vsub.f32 %v692, %v693
    %v695 = vand.u32 %v694, 4294901760
    %696 = vmatpush.msra.mxu0 %v695
    %v697 = vand.u32 %v622, 4294901760
    %v698 = vsub.f32 %v622, %v697
    %v699 = vand.u32 %v698, 4294901760
    %v700 = vsub.f32 %v698, %v699
    %v701 = vand.u32 %v700, 4294901760
    %702 = vmatpush.msra.mxu0 %v701
    %v703 = vand.u32 %v620, 4294901760
    %v704 = vsub.f32 %v620, %v703
    %v705 = vand.u32 %v704, 4294901760
    %v706 = vsub.f32 %v704, %v705
    %v707 = vand.u32 %v706, 4294901760
    %708 = vmatpush.msra.mxu0 %v707
    %v709 = vand.u32 %v618, 4294901760
    %v710 = vsub.f32 %v618, %v709
    %v711 = vand.u32 %v710, 4294901760
    %v712 = vsub.f32 %v710, %v711
    %v713 = vand.u32 %v712, 4294901760
    %714 = vmatpush.msra.mxu0 %v713
    %v715 = vand.u32 %v616, 4294901760
    %v716 = vsub.f32 %v616, %v715
    %v717 = vand.u32 %v716, 4294901760
    %v718 = vsub.f32 %v716, %v717
    %v719 = vand.u32 %v718, 4294901760
    %720 = vmatpush.msra.mxu0 %v719
    %v721 = vand.u32 %v140, 4294901760
    %722 = vmatmul.f32.gmra.mxu0 %v721
    %v723 = vpop.f32.mrf.mxu0
    %v724 = vadd.f32 %v663, %v723
    %725 = vdwg.mxu0
    %726 = vmatpush.msra.mxu0 0.0
    %727 = vmatpush.msra.mxu0 0.0
    %728 = vmatpush.msra.mxu0 0.0
    %729 = vmatpush.msra.mxu0 0.0
    %730 = vmatpush.msra.mxu0 0.0
    %731 = vmatpush.msra.mxu0 0.0
    %732 = vmatpush.msra.mxu0 0.0
    %733 = vmatpush.msra.mxu0 0.0
    %v734 = vand.u32 %v630, 4294901760
    %v735 = vsub.f32 %v630, %v734
    %736 = vmatpush.msra.mxu0 %v735
    %v737 = vand.u32 %v628, 4294901760
    %v738 = vsub.f32 %v628, %v737
    %739 = vmatpush.msra.mxu0 %v738
    %v740 = vand.u32 %v626, 4294901760
    %v741 = vsub.f32 %v626, %v740
    %742 = vmatpush.msra.mxu0 %v741
    %v743 = vand.u32 %v624, 4294901760
    %v744 = vsub.f32 %v624, %v743
    %745 = vmatpush.msra.mxu0 %v744
    %v746 = vand.u32 %v622, 4294901760
    %v747 = vsub.f32 %v622, %v746
    %748 = vmatpush.msra.mxu0 %v747
    %v749 = vand.u32 %v620, 4294901760
    %v750 = vsub.f32 %v620, %v749
    %751 = vmatpush.msra.mxu0 %v750
    %v752 = vand.u32 %v618, 4294901760
    %v753 = vsub.f32 %v618, %v752
    %754 = vmatpush.msra.mxu0 %v753
    %v755 = vand.u32 %v616, 4294901760
    %v756 = vsub.f32 %v616, %v755
    %757 = vmatpush.msra.mxu0 %v756
    %v758 = vand.u32 %v140, 4294901760
    %v759 = vsub.f32 %v140, %v758
    %760 = vmatmul.f32.gmra.mxu0 %v759
    %v761 = vpop.f32.mrf.mxu0
    %v762 = vadd.f32 %v724, %v761
    %763 = vdwg.mxu0
    %764 = vmatpush.msra.mxu0 0.0
    %765 = vmatpush.msra.mxu0 0.0
    %766 = vmatpush.msra.mxu0 0.0
    %767 = vmatpush.msra.mxu0 0.0
    %768 = vmatpush.msra.mxu0 0.0
    %769 = vmatpush.msra.mxu0 0.0
    %770 = vmatpush.msra.mxu0 0.0
    %771 = vmatpush.msra.mxu0 0.0
    %v772 = vand.u32 %v630, 4294901760
    %773 = vmatpush.msra.mxu0 %v772
    %v774 = vand.u32 %v628, 4294901760
    %775 = vmatpush.msra.mxu0 %v774
    %v776 = vand.u32 %v626, 4294901760
    %777 = vmatpush.msra.mxu0 %v776
    %v778 = vand.u32 %v624, 4294901760
    %779 = vmatpush.msra.mxu0 %v778
    %v780 = vand.u32 %v622, 4294901760
    %781 = vmatpush.msra.mxu0 %v780
    %v782 = vand.u32 %v620, 4294901760
    %783 = vmatpush.msra.mxu0 %v782
    %v784 = vand.u32 %v618, 4294901760
    %785 = vmatpush.msra.mxu0 %v784
    %v786 = vand.u32 %v616, 4294901760
    %787 = vmatpush.msra.mxu0 %v786
    %v788 = vand.u32 %v140, 4294901760
    %v789 = vsub.f32 %v140, %v788
    %v790 = vand.u32 %v789, 4294901760
    %791 = vmatmul.f32.gmra.mxu0 %v790
    %v792 = vpop.f32.mrf.mxu0
    %v793 = vadd.f32 %v762, %v792
    %794 = vdwg.mxu0
    %795 = vmatpush.msra.mxu0 0.0
    %796 = vmatpush.msra.mxu0 0.0
    %797 = vmatpush.msra.mxu0 0.0
    %798 = vmatpush.msra.mxu0 0.0
    %799 = vmatpush.msra.mxu0 0.0
    %800 = vmatpush.msra.mxu0 0.0
    %801 = vmatpush.msra.mxu0 0.0
    %802 = vmatpush.msra.mxu0 0.0
    %v803 = vand.u32 %v630, 4294901760
    %v804 = vsub.f32 %v630, %v803
    %v805 = vand.u32 %v804, 4294901760
    %806 = vmatpush.msra.mxu0 %v805
    %v807 = vand.u32 %v628, 4294901760
    %v808 = vsub.f32 %v628, %v807
    %v809 = vand.u32 %v808, 4294901760
    %810 = vmatpush.msra.mxu0 %v809
    %v811 = vand.u32 %v626, 4294901760
    %v812 = vsub.f32 %v626, %v811
    %v813 = vand.u32 %v812, 4294901760
    %814 = vmatpush.msra.mxu0 %v813
    %v815 = vand.u32 %v624, 4294901760
    %v816 = vsub.f32 %v624, %v815
    %v817 = vand.u32 %v816, 4294901760
    %818 = vmatpush.msra.mxu0 %v817
    %v819 = vand.u32 %v622, 4294901760
    %v820 = vsub.f32 %v622, %v819
    %v821 = vand.u32 %v820, 4294901760
    %822 = vmatpush.msra.mxu0 %v821
    %v823 = vand.u32 %v620, 4294901760
    %v824 = vsub.f32 %v620, %v823
    %v825 = vand.u32 %v824, 4294901760
    %826 = vmatpush.msra.mxu0 %v825
    %v827 = vand.u32 %v618, 4294901760
    %v828 = vsub.f32 %v618, %v827
    %v829 = vand.u32 %v828, 4294901760
    %830 = vmatpush.msra.mxu0 %v829
    %v831 = vand.u32 %v616, 4294901760
    %v832 = vsub.f32 %v616, %v831
    %v833 = vand.u32 %v832, 4294901760
    %834 = vmatpush.msra.mxu0 %v833
    %v835 = vand.u32 %v140, 4294901760
    %836 = vmatmul.f32.gmra.mxu0 %v835
    %v837 = vpop.f32.mrf.mxu0
    %v838 = vadd.f32 %v793, %v837
    %839 = vdwg.mxu0
    %840 = vmatpush.msra.mxu0 0.0
    %841 = vmatpush.msra.mxu0 0.0
    %842 = vmatpush.msra.mxu0 0.0
    %843 = vmatpush.msra.mxu0 0.0
    %844 = vmatpush.msra.mxu0 0.0
    %845 = vmatpush.msra.mxu0 0.0
    %846 = vmatpush.msra.mxu0 0.0
    %847 = vmatpush.msra.mxu0 0.0
    %v848 = vand.u32 %v630, 4294901760
    %849 = vmatpush.msra.mxu0 %v848
    %v850 = vand.u32 %v628, 4294901760
    %851 = vmatpush.msra.mxu0 %v850
    %v852 = vand.u32 %v626, 4294901760
    %853 = vmatpush.msra.mxu0 %v852
    %v854 = vand.u32 %v624, 4294901760
    %855 = vmatpush.msra.mxu0 %v854
    %v856 = vand.u32 %v622, 4294901760
    %857 = vmatpush.msra.mxu0 %v856
    %v858 = vand.u32 %v620, 4294901760
    %859 = vmatpush.msra.mxu0 %v858
    %v860 = vand.u32 %v618, 4294901760
    %861 = vmatpush.msra.mxu0 %v860
    %v862 = vand.u32 %v616, 4294901760
    %863 = vmatpush.msra.mxu0 %v862
    %v864 = vand.u32 %v140, 4294901760
    %865 = vmatmul.f32.gmra.mxu0 %v864
    %v866 = vpop.f32.mrf.mxu0
    %v867 = vadd.f32 %v838, %v866
    %868 = vdwg.mxu0
    %869 = vmatpush.msra.mxu0 0.0
    %870 = vmatpush.msra.mxu0 0.0
    %871 = vmatpush.msra.mxu0 0.0
    %872 = vmatpush.msra.mxu0 0.0
    %873 = vmatpush.msra.mxu0 0.0
    %874 = vmatpush.msra.mxu0 0.0
    %875 = vmatpush.msra.mxu0 0.0
    %876 = vmatpush.msra.mxu0 0.0
    %v877 = vand.u32 %v631, 4294901760
    %878 = vmatpush.msra.mxu0 %v877
    %v879 = vand.u32 %v629, 4294901760
    %880 = vmatpush.msra.mxu0 %v879
    %v881 = vand.u32 %v627, 4294901760
    %882 = vmatpush.msra.mxu0 %v881
    %v883 = vand.u32 %v625, 4294901760
    %884 = vmatpush.msra.mxu0 %v883
    %v885 = vand.u32 %v623, 4294901760
    %886 = vmatpush.msra.mxu0 %v885
    %v887 = vand.u32 %v621, 4294901760
    %888 = vmatpush.msra.mxu0 %v887
    %v889 = vand.u32 %v619, 4294901760
    %890 = vmatpush.msra.mxu0 %v889
    %v891 = vand.u32 %v617, 4294901760
    %892 = vmatpush.msra.mxu0 %v891
    %v893 = vand.u32 %v140, 4294901760
    %v894 = vsub.f32 %v140, %v893
    %v895 = vand.u32 %v894, 4294901760
    %v896 = vsub.f32 %v894, %v895
    %v897 = vand.u32 %v896, 4294901760
    %898 = vmatmul.f32.gmra.mxu0 %v897
    %v899 = vpop.f32.mrf.mxu0
    %v900 = vadd.f32 0.0, %v899
    %901 = vdwg.mxu0
    %902 = vmatpush.msra.mxu0 0.0
    %903 = vmatpush.msra.mxu0 0.0
    %904 = vmatpush.msra.mxu0 0.0
    %905 = vmatpush.msra.mxu0 0.0
    %906 = vmatpush.msra.mxu0 0.0
    %907 = vmatpush.msra.mxu0 0.0
    %908 = vmatpush.msra.mxu0 0.0
    %909 = vmatpush.msra.mxu0 0.0
    %v910 = vand.u32 %v631, 4294901760
    %v911 = vsub.f32 %v631, %v910
    %v912 = vand.u32 %v911, 4294901760
    %v913 = vsub.f32 %v911, %v912
    %v914 = vand.u32 %v913, 4294901760
    %915 = vmatpush.msra.mxu0 %v914
    %v916 = vand.u32 %v629, 4294901760
    %v917 = vsub.f32 %v629, %v916
    %v918 = vand.u32 %v917, 4294901760
    %v919 = vsub.f32 %v917, %v918
    %v920 = vand.u32 %v919, 4294901760
    %921 = vmatpush.msra.mxu0 %v920
    %v922 = vand.u32 %v627, 4294901760
    %v923 = vsub.f32 %v627, %v922
    %v924 = vand.u32 %v923, 4294901760
    %v925 = vsub.f32 %v923, %v924
    %v926 = vand.u32 %v925, 4294901760
    %927 = vmatpush.msra.mxu0 %v926
    %v928 = vand.u32 %v625, 4294901760
    %v929 = vsub.f32 %v625, %v928
    %v930 = vand.u32 %v929, 4294901760
    %v931 = vsub.f32 %v929, %v930
    %v932 = vand.u32 %v931, 4294901760
    %933 = vmatpush.msra.mxu0 %v932
    %v934 = vand.u32 %v623, 4294901760
    %v935 = vsub.f32 %v623, %v934
    %v936 = vand.u32 %v935, 4294901760
    %v937 = vsub.f32 %v935, %v936
    %v938 = vand.u32 %v937, 4294901760
    %939 = vmatpush.msra.mxu0 %v938
    %v940 = vand.u32 %v621, 4294901760
    %v941 = vsub.f32 %v621, %v940
    %v942 = vand.u32 %v941, 4294901760
    %v943 = vsub.f32 %v941, %v942
    %v944 = vand.u32 %v943, 4294901760
    %945 = vmatpush.msra.mxu0 %v944
    %v946 = vand.u32 %v619, 4294901760
    %v947 = vsub.f32 %v619, %v946
    %v948 = vand.u32 %v947, 4294901760
    %v949 = vsub.f32 %v947, %v948
    %v950 = vand.u32 %v949, 4294901760
    %951 = vmatpush.msra.mxu0 %v950
    %v952 = vand.u32 %v617, 4294901760
    %v953 = vsub.f32 %v617, %v952
    %v954 = vand.u32 %v953, 4294901760
    %v955 = vsub.f32 %v953, %v954
    %v956 = vand.u32 %v955, 4294901760
    %957 = vmatpush.msra.mxu0 %v956
    %v958 = vand.u32 %v140, 4294901760
    %959 = vmatmul.f32.gmra.mxu0 %v958
    %v960 = vpop.f32.mrf.mxu0
    %v961 = vadd.f32 %v900, %v960
    %962 = vdwg.mxu0
    %963 = vmatpush.msra.mxu0 0.0
    %964 = vmatpush.msra.mxu0 0.0
    %965 = vmatpush.msra.mxu0 0.0
    %966 = vmatpush.msra.mxu0 0.0
    %967 = vmatpush.msra.mxu0 0.0
    %968 = vmatpush.msra.mxu0 0.0
    %969 = vmatpush.msra.mxu0 0.0
    %970 = vmatpush.msra.mxu0 0.0
    %v971 = vand.u32 %v631, 4294901760
    %v972 = vsub.f32 %v631, %v971
    %973 = vmatpush.msra.mxu0 %v972
    %v974 = vand.u32 %v629, 4294901760
    %v975 = vsub.f32 %v629, %v974
    %976 = vmatpush.msra.mxu0 %v975
    %v977 = vand.u32 %v627, 4294901760
    %v978 = vsub.f32 %v627, %v977
    %979 = vmatpush.msra.mxu0 %v978
    %v980 = vand.u32 %v625, 4294901760
    %v981 = vsub.f32 %v625, %v980
    %982 = vmatpush.msra.mxu0 %v981
    %v983 = vand.u32 %v623, 4294901760
    %v984 = vsub.f32 %v623, %v983
    %985 = vmatpush.msra.mxu0 %v984
    %v986 = vand.u32 %v621, 4294901760
    %v987 = vsub.f32 %v621, %v986
    %988 = vmatpush.msra.mxu0 %v987
    %v989 = vand.u32 %v619, 4294901760
    %v990 = vsub.f32 %v619, %v989
    %991 = vmatpush.msra.mxu0 %v990
    %v992 = vand.u32 %v617, 4294901760
    %v993 = vsub.f32 %v617, %v992
    %994 = vmatpush.msra.mxu0 %v993
    %v995 = vand.u32 %v140, 4294901760
    %v996 = vsub.f32 %v140, %v995
    %997 = vmatmul.f32.gmra.mxu0 %v996
    %v998 = vpop.f32.mrf.mxu0
    %v999 = vadd.f32 %v961, %v998
    %1000 = vdwg.mxu0
    %1001 = vmatpush.msra.mxu0 0.0
    %1002 = vmatpush.msra.mxu0 0.0
    %1003 = vmatpush.msra.mxu0 0.0
    %1004 = vmatpush.msra.mxu0 0.0
    %1005 = vmatpush.msra.mxu0 0.0
    %1006 = vmatpush.msra.mxu0 0.0
    %1007 = vmatpush.msra.mxu0 0.0
    %1008 = vmatpush.msra.mxu0 0.0
    %v1009 = vand.u32 %v631, 4294901760
    %1010 = vmatpush.msra.mxu0 %v1009
    %v1011 = vand.u32 %v629, 4294901760
    %1012 = vmatpush.msra.mxu0 %v1011
    %v1013 = vand.u32 %v627, 4294901760
    %1014 = vmatpush.msra.mxu0 %v1013
    %v1015 = vand.u32 %v625, 4294901760
    %1016 = vmatpush.msra.mxu0 %v1015
    %v1017 = vand.u32 %v623, 4294901760
    %1018 = vmatpush.msra.mxu0 %v1017
    %v1019 = vand.u32 %v621, 4294901760
    %1020 = vmatpush.msra.mxu0 %v1019
    %v1021 = vand.u32 %v619, 4294901760
    %1022 = vmatpush.msra.mxu0 %v1021
    %v1023 = vand.u32 %v617, 4294901760
    %1024 = vmatpush.msra.mxu0 %v1023
    %v1025 = vand.u32 %v140, 4294901760
    %v1026 = vsub.f32 %v140, %v1025
    %v1027 = vand.u32 %v1026, 4294901760
    %1028 = vmatmul.f32.gmra.mxu0 %v1027
    %v1029 = vpop.f32.mrf.mxu0
    %v1030 = vadd.f32 %v999, %v1029
    %1031 = vdwg.mxu0
    %1032 = vmatpush.msra.mxu0 0.0
    %1033 = vmatpush.msra.mxu0 0.0
    %1034 = vmatpush.msra.mxu0 0.0
    %1035 = vmatpush.msra.mxu0 0.0
    %1036 = vmatpush.msra.mxu0 0.0
    %1037 = vmatpush.msra.mxu0 0.0
    %1038 = vmatpush.msra.mxu0 0.0
    %1039 = vmatpush.msra.mxu0 0.0
    %v1040 = vand.u32 %v631, 4294901760
    %v1041 = vsub.f32 %v631, %v1040
    %v1042 = vand.u32 %v1041, 4294901760
    %1043 = vmatpush.msra.mxu0 %v1042
    %v1044 = vand.u32 %v629, 4294901760
    %v1045 = vsub.f32 %v629, %v1044
    %v1046 = vand.u32 %v1045, 4294901760
    %1047 = vmatpush.msra.mxu0 %v1046
    %v1048 = vand.u32 %v627, 4294901760
    %v1049 = vsub.f32 %v627, %v1048
    %v1050 = vand.u32 %v1049, 4294901760
    %1051 = vmatpush.msra.mxu0 %v1050
    %v1052 = vand.u32 %v625, 4294901760
    %v1053 = vsub.f32 %v625, %v1052
    %v1054 = vand.u32 %v1053, 4294901760
    %1055 = vmatpush.msra.mxu0 %v1054
    %v1056 = vand.u32 %v623, 4294901760
    %v1057 = vsub.f32 %v623, %v1056
    %v1058 = vand.u32 %v1057, 4294901760
    %1059 = vmatpush.msra.mxu0 %v1058
    %v1060 = vand.u32 %v621, 4294901760
    %v1061 = vsub.f32 %v621, %v1060
    %v1062 = vand.u32 %v1061, 4294901760
    %1063 = vmatpush.msra.mxu0 %v1062
    %v1064 = vand.u32 %v619, 4294901760
    %v1065 = vsub.f32 %v619, %v1064
    %v1066 = vand.u32 %v1065, 4294901760
    %1067 = vmatpush.msra.mxu0 %v1066
    %v1068 = vand.u32 %v617, 4294901760
    %v1069 = vsub.f32 %v617, %v1068
    %v1070 = vand.u32 %v1069, 4294901760
    %1071 = vmatpush.msra.mxu0 %v1070
    %v1072 = vand.u32 %v140, 4294901760
    %1073 = vmatmul.f32.gmra.mxu0 %v1072
    %v1074 = vpop.f32.mrf.mxu0
    %v1075 = vadd.f32 %v1030, %v1074
    %1076 = vdwg.mxu0
    %1077 = vmatpush.msra.mxu0 0.0
    %1078 = vmatpush.msra.mxu0 0.0
    %1079 = vmatpush.msra.mxu0 0.0
    %1080 = vmatpush.msra.mxu0 0.0
    %1081 = vmatpush.msra.mxu0 0.0
    %1082 = vmatpush.msra.mxu0 0.0
    %1083 = vmatpush.msra.mxu0 0.0
    %1084 = vmatpush.msra.mxu0 0.0
    %v1085 = vand.u32 %v631, 4294901760
    %1086 = vmatpush.msra.mxu0 %v1085
    %v1087 = vand.u32 %v629, 4294901760
    %1088 = vmatpush.msra.mxu0 %v1087
    %v1089 = vand.u32 %v627, 4294901760
    %1090 = vmatpush.msra.mxu0 %v1089
    %v1091 = vand.u32 %v625, 4294901760
    %1092 = vmatpush.msra.mxu0 %v1091
    %v1093 = vand.u32 %v623, 4294901760
    %1094 = vmatpush.msra.mxu0 %v1093
    %v1095 = vand.u32 %v621, 4294901760
    %1096 = vmatpush.msra.mxu0 %v1095
    %v1097 = vand.u32 %v619, 4294901760
    %1098 = vmatpush.msra.mxu0 %v1097
    %v1099 = vand.u32 %v617, 4294901760
    %1100 = vmatpush.msra.mxu0 %v1099
    %v1101 = vand.u32 %v140, 4294901760
    %1102 = vmatmul.f32.gmra.mxu0 %v1101
    %v1103 = vpop.f32.mrf.mxu0
    %v1104 = vadd.f32 %v1075, %v1103
    %1105 = vdwg.mxu0
    %v1106 = vmul.f32 %v377, %v867
    %v1107 = vmul.f32 %v614, %v1104
    %1109 = vset.pattern.permute.xlu0 3
    %1110 = vperm.xlu0 %1109, %v50
    %v1111 = vpop.permute.xlu0 %1110
    %v1113 = vadd.f32 %v1106, %v1111
    %v1114 = vadd.f32 %v1107, %v1111
    %1115 = vst [vmem:[#allocation7] sm:$0xff] %v1113
    %1116 = vst [vmem:[#allocation7 + $0x8] sm:$0xff] %v1114
    // Predicated region
    $region26: #{tpu_custom_call.1} parent=1 // pred_check
      _
    $region27: #{tpu_custom_call.1} parent=1 // pred_check_branch
      %1118 = sbr.rel (0) target = $region29
    $region28: #{tpu_custom_call.1} parent=1 // pred_region
      %1120 = vsyncadd [#allocation4], 0
      %s1122 = sshll.u32 [#allocation7], 4
      %s1123 = int_to_ptr.vmem [resolvable:$true] %s1122
      %s1124 = sshll.u32 %s4, 4
      %s1125 = int_to_ptr.hbm [resolvable:$true] %s1124
      %1127 = dma.vmem_to_hbm [thread:$0]  %s1123, 256, %s1125, [#allocation4]
    $region29: #{tpu_custom_call.1} parent=1 // pred_fallthru
      _
    // Predicated region
    $region30: #{tpu_custom_call.1} parent=1 // pred_check
      _
    $region31: #{tpu_custom_call.1} parent=1 // pred_check_branch
      %1129 = sbr.rel (0) target = $region33
    $region32: #{tpu_custom_call.1} parent=1 // pred_region
      %1131 = dma.done [#allocation4], 256
    $region33: #{tpu_custom_call.1} parent=1 // pred_fallthru
      _
    %1132 = vsyncpa [#allocation3], 1
    %1133 = vsyncpa [#allocation6], 1
    %1134 = vsyncpa [#allocation4], 1

</llo_original>
